<compile_context>
chip_gen: v5e
topology: v5e:2x2
jax: 0.10.0
libtpu: 0.0.40
codegen_flags: <defaults>
</compile_context>

<pallas_src>
import functools

import jax
import jax.numpy as jnp
from jax.experimental import pallas as pl
from jax.experimental.pallas import tpu as pltpu


def _cdiv(a, b):
    return -(-a // b)


def _round_up(a, b):
    return _cdiv(a, b) * b


# ---------------------------------------------------------------------------
# Kernel
# ---------------------------------------------------------------------------
def wan_loss_kernel(logits_ref, labels_ref, out_ref, acc_ref, *,
                    gamma, eps, approx_sigmoid):
    """One (block_rows, C) tile of the fused WAN loss.

    logits_ref: (block_rows, C) VMEM, any float dtype (upcast to f32 here)
    labels_ref: (block_rows, C) VMEM, float or int (values {1, 0, other})
    out_ref   : (1, 1) SMEM      -- per-parallel-slice partial sum
    acc_ref   : (8, C) f32 VMEM  -- running vreg-wise partial sum
    """
    r = pl.program_id(1)

    @pl.when(r == 0)
    def _init():
        acc_ref[...] = jnp.zeros_like(acc_ref)

    x = logits_ref[...].astype(jnp.float32)
    y = labels_ref[...].astype(jnp.float32)

    # sigmoid: one EUP exp + one reciprocal. exp(-x) overflow -> sig == 0,
    # matching torch.sigmoid saturation before the +eps guard.
    denom = 1.0 + jnp.exp(-x)
    if approx_sigmoid:
        # Single EUP vrcp (co-issues in an idle EUP gap); ~2^-12 rel error,
        # can shift the loss in the 4th-5th decimal -> off by default.
        sig = pl.reciprocal(denom, approx=True)
    else:
        sig = 1.0 / denom

    # Select the log argument BEFORE the log -> one log/element instead of two.
    # Keep the (1 - sig) form for the negative branch; do NOT rewrite it as
    # exp(-x)/(1+exp(-x)), which NaNs when exp(-x) overflows.
    arg = jnp.where(y == 1.0, sig, 1.0 - sig) + eps      # >= eps -> log finite
    logv = jnp.log(arg)
    scale = jnp.where(y == 1.0, -1.0,
                      jnp.where(y == 0.0, -gamma, 0.0))  # 0 -> ignored entries
    loss = scale * logv                                  # (block_rows, C) f32

    # Per-step partial sum: fold groups of 8 rows (cross-vreg VPU adds only,
    # no cross-lane XLU work until the epilogue).
    br, c = loss.shape
    acc_ref[...] += jnp.sum(loss.reshape(br // 8, 8, c), axis=0)

    @pl.when(r == pl.num_programs(1) - 1)
    def _finalize():
        out_ref[0, 0] = jnp.sum(acc_ref[...])            # single XLU reduce


# ---------------------------------------------------------------------------
# Wrapper
# ---------------------------------------------------------------------------
def wan_loss(logits, labels, gamma=0.3, eps=1e-5, *,
             block_rows=512, num_parallel=2, approx_sigmoid=False):
    """Mean WAN loss over a (B, C) logits/labels pair -> f32 scalar.

    Inputs keep the caller's dtype (f32/bf16 logits, float or int labels) and
    are upcast inside the kernel — no extra wrapper-side HBM pass for casts.
    Arrays are padded (labels pad value = -1, i.e. the "ignored" branch that
    contributes exactly 0) only if shapes are not already (8,128)-aligned and
    divisible by the tiling.
    """
    assert logits.shape == labels.shape and logits.ndim == 2
    B, C = logits.shape
    n = B * C                                    # mean denominator (UNpadded)

    # ---- tile sizing -------------------------------------------------------
    # Default block: (512, C_pad) f32 = 256 KiB per buffer at C=128; with two
    # inputs double-buffered ~1 MiB live VMEM, safe on v5e/v6e/v7x defaults.
    C_pad = _round_up(C, 128)                    # lane-dense last dim
    br = _round_up(min(block_rows, B), 8)        # sublane-aligned row block
    n_blocks = _cdiv(B, br)
    P = max(1, min(num_parallel, n_blocks))      # parallel slices (v7x: 2 TCs)
    blocks_per_slice = _cdiv(n_blocks, P)
    B_pad = P * blocks_per_slice * br

    # ---- pad (padded labels = -1 -> ignored, contribute exactly 0) ----------
    if (B_pad != B) or (C_pad != C):
        logits = jnp.pad(logits, ((0, B_pad - B), (0, C_pad - C)))
        labels = jnp.pad(labels, ((0, B_pad - B), (0, C_pad - C)),
                         constant_values=-1)

    n_pad = B_pad * C_pad
    in_bytes = n_pad * (logits.dtype.itemsize + labels.dtype.itemsize)
    cost = pl.CostEstimate(flops=10 * n_pad,
                           transcendentals=2 * n_pad,      # exp + log
                           bytes_accessed=in_bytes + P * 4)

    kernel = functools.partial(wan_loss_kernel, gamma=float(gamma),
                               eps=float(eps), approx_sigmoid=approx_sigmoid)

    in_map = lambda p, r: (p * blocks_per_slice + r, 0)
    partials = pl.pallas_call(
        kernel,
        grid=(P, blocks_per_slice),
        in_specs=[
            pl.BlockSpec((br, C_pad), in_map),             # logits tile
            pl.BlockSpec((br, C_pad), in_map),             # labels tile
        ],
        out_specs=pl.BlockSpec((1, 1), lambda p, r: (p, 0),
                               memory_space=pltpu.MemorySpace.SMEM),
        out_shape=jax.ShapeDtypeStruct((P, 1), jnp.float32),
        scratch_shapes=[pltpu.VMEM((8, C_pad), jnp.float32)],
        compiler_params=pltpu.CompilerParams(
            dimension_semantics=("parallel", "arbitrary")),
        cost_estimate=cost,
    )(logits, labels)

    # Add the per-slice partials (cheap (P,1) XLA op) and turn sum into mean.
    return jnp.sum(partials) * (1.0 / n)


# ---------------------------------------------------------------------------
# Pure-JAX reference (for correctness check only)
# ---------------------------------------------------------------------------
def wan_loss_ref(logits, labels, gamma=0.3, eps=1e-5):
    logits = logits.astype(jnp.float32)
    labels = labels.astype(jnp.float32)
    sig = 1.0 / (1.0 + jnp.exp(-logits))
    pos = -jnp.log(sig + eps)
    neg = gamma * -jnp.log(1.0 - sig + eps)
    loss = jnp.where(labels == 1.0, pos, jnp.where(labels == 0.0, neg, 0.0))
    return jnp.mean(loss)


# ---------------------------------------------------------------------------
# Main
# ---------------------------------------------------------------------------
if __name__ == "__main__":
    key = jax.random.PRNGKey(0)
    k1, k2, k3, k4 = jax.random.split(key, 4)

    # --- case 1: aligned (8, 128), f32 logits + f32 labels -------------------
    B1, C1 = 8, 128
    logits1 = jax.random.normal(k1, (B1, C1), dtype=jnp.float32)
    labels1 = jax.random.randint(k2, (B1, C1), minval=-1, maxval=2
                                 ).astype(jnp.float32)   # {-1, 0, 1}

    out1 = wan_loss(logits1, labels1, gamma=0.3)
    jax.block_until_ready(out1)
    ref1 = wan_loss_ref(logits1, labels1, gamma=0.3)
    assert out1.shape == ()
    assert jnp.allclose(out1, ref1, rtol=1e-5, atol=1e-6), (float(out1), float(ref1))

    # --- case 2: ragged shape, bf16 logits + int32 labels, multi-step grid ---
    # Exercises padding, the cross-step accumulator and the parallel slices.
    B2, C2 = 40, 200
    logits2 = jax.random.normal(k3, (B2, C2), dtype=jnp.float32
                                ).astype(jnp.bfloat16)
    labels2 = jax.random.randint(k4, (B2, C2), minval=-1, maxval=2)  # int32

    out2 = wan_loss(logits2, labels2, gamma=0.3, block_rows=16, num_parallel=2)
    jax.block_until_ready(out2)
    ref2 = wan_loss_ref(logits2, labels2, gamma=0.3)
    assert jnp.allclose(out2, ref2, rtol=1e-5, atol=1e-6), (float(out2), float(ref2))

    print("KERNEL_OK")
</pallas_src>

<mosaic_0001>
module attributes {stable_mosaic.version = 11 : i64} {
  func.func @wan_loss_kernel(%arg0: i32, %arg1: i32, %arg2: memref<8x128xf32, #tpu.memory_space<vmem>>, %arg3: memref<8x128xf32, #tpu.memory_space<vmem>>, %arg4: memref<1x1xf32, #tpu.memory_space<smem>>, %arg5: memref<8x128xf32, #tpu.memory_space<vmem>>) attributes {dimension_semantics = [#tpu.dimension_semantics<parallel>, #tpu.dimension_semantics<arbitrary>], iteration_bounds = array<i64: 1, 1>, scalar_prefetch = 0 : i64, scratch_operands = 1 : i64, tpu.core_type = #tpu.core_type<tc>, window_params = [{transform_indices = @transform_0, window_bounds = array<i64: 8, 128>}, {transform_indices = @transform_1, window_bounds = array<i64: 8, 128>}, {transform_indices = @transform_2, window_bounds = array<i64: 1, 1>}]} {
    %c0_i32 = arith.constant 0 : i32
    %0 = arith.cmpi eq, %arg1, %c0_i32 : i32
    %1 = arith.extui %0 : i1 to i32
    %c0_i32_0 = arith.constant 0 : i32
    %2 = arith.cmpi ne, %1, %c0_i32_0 : i32
    scf.if %2 {
      %cst_21 = arith.constant 0.000000e+00 : f32
      %38 = vector.broadcast %cst_21 : f32 to vector<8x128xf32>
      %c0_22 = arith.constant 0 : index
      %c0_23 = arith.constant 0 : index
      %39 = vector.load %arg5[%c0_22, %c0_23] : memref<8x128xf32, #tpu.memory_space<vmem>>, vector<8x128xf32>
      tpu.vector_store %arg5[%c0_22, %c0_23], %38 {strides = array<i32>} : memref<8x128xf32, #tpu.memory_space<vmem>>, vector<8x128xf32>,
    } else {
    }
    %c0 = arith.constant 0 : index
    %c0_1 = arith.constant 0 : index
    %3 = vector.load %arg2[%c0, %c0_1] : memref<8x128xf32, #tpu.memory_space<vmem>>, vector<8x128xf32>
    %c0_2 = arith.constant 0 : index
    %c0_3 = arith.constant 0 : index
    %4 = vector.load %arg3[%c0_2, %c0_3] : memref<8x128xf32, #tpu.memory_space<vmem>>, vector<8x128xf32>
    %cst = arith.constant 0.000000e+00 : f32
    %5 = vector.broadcast %cst : f32 to vector<8x128xf32>
    %6 = arith.subf %5, %3 : vector<8x128xf32>
    %7 = math.exp %6 : vector<8x128xf32>
    %cst_4 = arith.constant 1.000000e+00 : f32
    %8 = vector.broadcast %cst_4 : f32 to vector<8x128xf32>
    %9 = arith.addf %8, %7 : vector<8x128xf32>
    %cst_5 = arith.constant 1.000000e+00 : f32
    %10 = vector.broadcast %cst_5 : f32 to vector<8x128xf32>
    %11 = arith.divf %10, %9 : vector<8x128xf32>
    %cst_6 = arith.constant 1.000000e+00 : f32
    %12 = vector.broadcast %cst_6 : f32 to vector<8x128xf32>
    %13 = arith.cmpf oeq, %4, %12 : vector<8x128xf32>
    %cst_7 = arith.constant 1.000000e+00 : f32
    %14 = vector.broadcast %cst_7 : f32 to vector<8x128xf32>
    %15 = arith.subf %14, %11 : vector<8x128xf32>
    %16 = arith.select %13, %11, %15 : vector<8x128xi1>, vector<8x128xf32>
    %cst_8 = arith.constant 9.99999974E-6 : f32
    %17 = vector.broadcast %cst_8 : f32 to vector<8x128xf32>
    %18 = arith.addf %16, %17 : vector<8x128xf32>
    %19 = math.log %18 : vector<8x128xf32>
    %cst_9 = arith.constant 1.000000e+00 : f32
    %20 = vector.broadcast %cst_9 : f32 to vector<8x128xf32>
    %21 = arith.cmpf oeq, %4, %20 : vector<8x128xf32>
    %cst_10 = arith.constant 0.000000e+00 : f32
    %22 = vector.broadcast %cst_10 : f32 to vector<8x128xf32>
    %23 = arith.cmpf oeq, %4, %22 : vector<8x128xf32>
    %cst_11 = arith.constant -3.000000e-01 : f32
    %cst_12 = arith.constant 0.000000e+00 : f32
    %24 = vector.broadcast %cst_11 : f32 to vector<8x128xf32>
    %25 = vector.broadcast %cst_12 : f32 to vector<8x128xf32>
    %26 = arith.select %23, %24, %25 : vector<8x128xi1>, vector<8x128xf32>
    %cst_13 = arith.constant -1.000000e+00 : f32
    %27 = vector.broadcast %cst_13 : f32 to vector<8x128xf32>
    %28 = arith.select %21, %27, %26 : vector<8x128xi1>, vector<8x128xf32>
    %29 = arith.mulf %28, %19 : vector<8x128xf32>
    %c0_14 = arith.constant 0 : index
    %c0_15 = arith.constant 0 : index
    %30 = vector.load %arg5[%c0_14, %c0_15] : memref<8x128xf32, #tpu.memory_space<vmem>>, vector<8x128xf32>
    %31 = vector.shape_cast %29 : vector<8x128xf32> to vector<1x8x128xf32>
    %cst_16 = arith.constant dense<0.000000e+00> : vector<8x128xf32>
    %32 = vector.multi_reduction <add>, %31, %cst_16 [0] : vector<1x8x128xf32> to vector<8x128xf32>
    %33 = arith.addf %30, %32 : vector<8x128xf32>
    %c0_17 = arith.constant 0 : index
    %c0_18 = arith.constant 0 : index
    %34 = vector.load %arg5[%c0_17, %c0_18] : memref<8x128xf32, #tpu.memory_space<vmem>>, vector<8x128xf32>
    tpu.vector_store %arg5[%c0_17, %c0_18], %33 {strides = array<i32>} : memref<8x128xf32, #tpu.memory_space<vmem>>, vector<8x128xf32>,
    %c0_i32_19 = arith.constant 0 : i32
    %35 = arith.cmpi eq, %arg1, %c0_i32_19 : i32
    %36 = arith.extui %35 : i1 to i32
    %c0_i32_20 = arith.constant 0 : i32
    %37 = arith.cmpi ne, %36, %c0_i32_20 : i32
    scf.if %37 {
      %c0_21 = arith.constant 0 : index
      %c0_22 = arith.constant 0 : index
      %38 = vector.load %arg5[%c0_21, %c0_22] : memref<8x128xf32, #tpu.memory_space<vmem>>, vector<8x128xf32>
      %39 = vector.shape_cast %38 : vector<8x128xf32> to vector<1x8x128xf32>
      %cst_23 = arith.constant dense<0.000000e+00> : vector<1xf32>
      %40 = vector.multi_reduction <add>, %39, %cst_23 [1, 2] : vector<1x8x128xf32> to vector<1xf32>
      %41 = vector.shape_cast %40 : vector<1xf32> to vector<1x1x1xf32>
      %42 = vector.extract %41[0, 0, 0] : f32 from vector<1x1x1xf32>
      %c0_24 = arith.constant 0 : index
      %c0_25 = arith.constant 0 : index
      %43 = memref.load %arg4[%c0_24, %c0_25] : memref<1x1xf32, #tpu.memory_space<smem>>
      memref.store %42, %arg4[%c0_24, %c0_25] : memref<1x1xf32, #tpu.memory_space<smem>>
    } else {
    }
    return
  }
  func.func @transform_0(%arg0: i32, %arg1: i32) -> (i32, i32) {
    %c1_i32 = arith.constant 1 : i32
    %0 = arith.muli %arg0, %c1_i32 : i32
    %1 = arith.addi %0, %arg1 : i32
    %c0_i32 = arith.constant 0 : i32
    %c0_i32_0 = arith.constant 0 : i32
    return %1, %c0_i32 : i32, i32
  }
  func.func @transform_1(%arg0: i32, %arg1: i32) -> (i32, i32) {
    %c1_i32 = arith.constant 1 : i32
    %0 = arith.muli %arg0, %c1_i32 : i32
    %1 = arith.addi %0, %arg1 : i32
    %c0_i32 = arith.constant 0 : i32
    %c0_i32_0 = arith.constant 0 : i32
    return %1, %c0_i32 : i32, i32
  }
  func.func @transform_2(%arg0: i32, %arg1: i32) -> (i32, i32) {
    %c0_i32 = arith.constant 0 : i32
    %c0_i32_0 = arith.constant 0 : i32
    return %arg0, %c0_i32 : i32, i32
  }
}

</mosaic_0001>

<llo_original>
// kernel: tpu_custom_call.1
$region0: #{tpu_custom_call.1}
  #allocation0 [shape = 'u32[]', space=smem, size = 0x4, offset = 0x4, fixed_abs, tag = 'smem constant byte address 0x4 - core index']
  #allocation1 [shape = 'u32[72,128]{1,0:T(1,128)}', space=vmem, size = 0x9000, scoped, tag = 'internal scratch']
  #allocation2 [shape = 'f32[8,128]{1,0:T(8,128)}', space=vmem, size = 0x1000, scoped, tag = 'scratch operand']
  %s0 = inlined_call_operand.hbm [shape: f32[8,128], index: 0, kind: input, shape index: {}]
  %s1 = inlined_call_operand.hbm [shape: f32[8,128], index: 1, kind: input, shape index: {}]
  %s2 = inlined_call_operand.hbm [shape: f32[1,1], index: 2, kind: output, shape index: {}]
  %s3 = sld [smem:[#allocation0]]
  $region34: #{tpu_custom_call.1} parent=0
    _
  %s5 = ssub.s32 1, %s3
  %s6 = scalar_select 0, %s5, %s3
  $region1: #{tpu_custom_call.1} parent=0
    #allocation3 [shape = 'u8[4096]{0}', space=vmem, size = 0x1000, scoped, tag = 'input window, operand 0, single buffered']
    #allocation4 [shape = 's32[1]{0}', space=sflag, size = 0x4, scoped, tag = 'scoped memory for tpu_custom_call.1']
    #allocation5 [shape = 's32[1]{0}', space=sflag, size = 0x4, scoped, tag = 'scoped memory for tpu_custom_call.1']
    #allocation6 [shape = 'u8[4096]{0}', space=vmem, size = 0x1000, scoped, tag = 'input window, operand 1, single buffered']
    #allocation7 [shape = 's32[1]{0}', space=sflag, size = 0x4, scoped, tag = 'scoped memory for tpu_custom_call.1']
    #allocation8 [shape = 'u8[512]{0}', space=smem, size = 0x200, scoped, tag = 'output window, operand 0, single buffered']
    %7 = vsyncpa [#allocation4], 0
    %8 = vsyncpa [#allocation7], 0
    %9 = vsyncpa [#allocation5], 0
    // Predicated region
    $region2: #{tpu_custom_call.1} parent=1 // pred_check
      _
    $region3: #{tpu_custom_call.1} parent=1 // pred_check_branch
      %11 = sbr.rel (0) target = $region5
    $region4: #{tpu_custom_call.1} parent=1 // pred_region
      %s12 = sadd.s32 0, 0
      %14 = vsyncadd [#allocation4], 0
      %s15 = smul.addr %s12, 8
      %s16 = scalar_lea.hbm %s0, %s15
      %s18 = sshll.u32 %s16, 4
      %s19 = int_to_ptr.hbm [resolvable:$true] %s18
      %s20 = sshll.u32 [#allocation3], 4
      %s21 = int_to_ptr.vmem [resolvable:$true] %s20
      %23 = dma.hbm_to_vmem [thread:$0]  %s19, 128, %s21, [#allocation4]
    $region5: #{tpu_custom_call.1} parent=1 // pred_fallthru
      _
    // Predicated region
    $region6: #{tpu_custom_call.1} parent=1 // pred_check
      _
    $region7: #{tpu_custom_call.1} parent=1 // pred_check_branch
      %25 = sbr.rel (0) target = $region9
    $region8: #{tpu_custom_call.1} parent=1 // pred_region
      %s26 = sadd.s32 0, 0
      %28 = vsyncadd [#allocation7], 0
      %s29 = smul.addr %s26, 8
      %s30 = scalar_lea.hbm %s1, %s29
      %s32 = sshll.u32 %s30, 4
      %s33 = int_to_ptr.hbm [resolvable:$true] %s32
      %s34 = sshll.u32 [#allocation6], 4
      %s35 = int_to_ptr.vmem [resolvable:$true] %s34
      %37 = dma.hbm_to_vmem [thread:$0]  %s33, 128, %s35, [#allocation7]
    $region9: #{tpu_custom_call.1} parent=1 // pred_fallthru
      _
    // Predicated region
    $region10: #{tpu_custom_call.1} parent=1 // pred_check
      _
    $region11: #{tpu_custom_call.1} parent=1 // pred_check_branch
      %39 = sbr.rel (0) target = $region13
    $region12: #{tpu_custom_call.1} parent=1 // pred_region
      %41 = dma.done [#allocation4], 128
    $region13: #{tpu_custom_call.1} parent=1 // pred_fallthru
      _
    // Predicated region
    $region14: #{tpu_custom_call.1} parent=1 // pred_check
      _
    $region15: #{tpu_custom_call.1} parent=1 // pred_check_branch
      %43 = sbr.rel (0) target = $region17
    $region16: #{tpu_custom_call.1} parent=1 // pred_region
      %45 = dma.done [#allocation7], 128
    $region17: #{tpu_custom_call.1} parent=1 // pred_fallthru
      _
    %s46 = sadd.s32 0, 0
    %s47 = sadd.s32 0, 0
    %p48 = scmp.eq.s32.totalorder 0, 0
    // Predicated region
    $region18: #{tpu_custom_call.1} parent=1 // pred_check
      %p49 = pneg %p48
    $region19: #{tpu_custom_call.1} parent=1 // pred_check_branch
      %51 = sbr.rel (%p49) target = $region21
    $region20: #{tpu_custom_call.1} parent=1 // pred_region
      %52 = vst [vmem:[#allocation2] sm:$0xff] 0.0
    $region21: #{tpu_custom_call.1} parent=1 // pred_fallthru
      _
    %v53 = vld [vmem:[#allocation3] sm:$0xff]
    %v54 = vld [vmem:[#allocation6] sm:$0xff]
    %v55 = vsub.f32 0.0, %v53
    %v56 = vmul.f32 %v55, 1.442695
    %v57 = vpow.pop %v56
    %v58 = vadd.f32 %v57, 1.0
    %v59 = vrcp.pop %v58
    %v60 = vmul.f32 %v58, %v59
    %v61 = vsub.f32 1.0, %v60
    %v62 = vmul.f32 %v59, %v61
    %v63 = vadd.f32 %v59, %v62
    %vm64 = vweird.f32 %v58
    %vm65 = vweird.f32 %v59
    %vm66 = vmor %vm64, %vm65
    %v67 = vsel %vm66, %v59, %v63
    %v68 = vand.u32 2147483647, %v58
    %vm69 = vcmp.eq.f32.partialorder %v68, 8.507059e+37
    %v70 = vand.u32 %v58, 2147483648
    %v71 = vor.u32 1.1754944e-38, %v70
    %v72 = vsel %vm69, %v71, %v67
    %v73 = vmul.f32 1.0, %v72
    %vm74 = vcmp.eq.f32.partialorder %v54, 1.0
    %v75 = vsub.f32 1.0, %v73
    %v76 = vsel %vm74, %v73, %v75
    %v77 = vadd.f32 %v76, 1e-05
    %v78 = vlog2.pop %v77
    %v79 = vmul.f32 %v78, 0.6931472
    %vm80 = vcmp.eq.f32.partialorder %v54, 0.0
    %v81 = vsel %vm80, -0.3, 0.0
    %v82 = vsel %vm74, -1.0, %v81
    %v83 = vmul.f32 %v82, %v79
    %v84 = vld [vmem:[#allocation2] sm:$0xff]
    %v85 = vadd.f32 %v83, 0.0
    %v86 = vadd.f32 %v84, %v85
    %87 = vst [vmem:[#allocation2] sm:$0xff] %v86
    // Predicated region
    $region22: #{tpu_custom_call.1} parent=1 // pred_check
      %p88 = pneg %p48
    $region23: #{tpu_custom_call.1} parent=1 // pred_check_branch
      %90 = sbr.rel (%p88) target = $region25
    $region24: #{tpu_custom_call.1} parent=1 // pred_region
      %v91 = vld [vmem:[#allocation2] sm:$0xff]
      %92 = vadd.xlane.f32.xlu0 %v91
      %v93 = vpop.xlane.xlu0 %92
      %v94 = vrot.slane %v93, 4
      %v95 = vadd.f32 %v93, %v94
      %v96 = vrot.slane %v95, 2
      %v97 = vadd.f32 %v95, %v96
      %v98 = vrot.slane %v97, 1
      %v99 = vadd.f32 %v97, %v98
      %s100 = vtos %v99
      %s101 = scalar_lea.smem [#allocation8], 0
      %102 = sst [smem:[%s101]] %s100
    $region25: #{tpu_custom_call.1} parent=1 // pred_fallthru
      _
    // Predicated region
    $region26: #{tpu_custom_call.1} parent=1 // pred_check
      _
    $region27: #{tpu_custom_call.1} parent=1 // pred_check_branch
      %104 = sbr.rel (0) target = $region29
    $region28: #{tpu_custom_call.1} parent=1 // pred_region
      %106 = vsyncadd [#allocation5], 0
      %s108 = sshll.u32 %s2, 4
      %s109 = int_to_ptr.hbm [resolvable:$true] %s108
      %111 = dma.smem_to_hbm [#allocation8], 16, %s109, [#allocation5]
    $region29: #{tpu_custom_call.1} parent=1 // pred_fallthru
      _
    // Predicated region
    $region30: #{tpu_custom_call.1} parent=1 // pred_check
      _
    $region31: #{tpu_custom_call.1} parent=1 // pred_check_branch
      %113 = sbr.rel (0) target = $region33
    $region32: #{tpu_custom_call.1} parent=1 // pred_region
      %115 = dma.done [#allocation5], 16
    $region33: #{tpu_custom_call.1} parent=1 // pred_fallthru
      _
    %116 = sfence
    %117 = vsyncpa [#allocation4], 1
    %118 = vsyncpa [#allocation7], 1
    %119 = vsyncpa [#allocation5], 1

</llo_original>
